<compile_context>
chip_gen: v7x
topology: tpu7x:2x2x1
jax: 0.10.0
libtpu: 0.0.40
codegen_flags: <defaults>
</compile_context>

<pallas_src>
import jax
import jax.numpy as jnp
from jax.experimental import pallas as pl
from jax.experimental.pallas import tpu as pltpu

# ---------------------------------------------------------------------------
# VMEM budgeting (bytes).
# ---------------------------------------------------------------------------
_VMEM_LIMIT_BYTES = 48 * 1024 * 1024       # explicit scoped limit (v7x-safe)
_TILE_VMEM_BUDGET = 40 * 1024 * 1024       # headroom left for tiles under the limit
_WEIGHT_RESIDENT_LIMIT = 24 * 1024 * 1024  # above this, K-tile the hidden dim
_MAX_BATCH_TILE = 2048


# ---------------------------------------------------------------------------
# Kernels
# ---------------------------------------------------------------------------
def _fused_kernel(x_ref, w_ref, b_ref, out_ref):
    # [TB, H] @ [H, 2L] + [1, 2L] -> [TB, 2L], f32 accumulation on the MXU.
    out_ref[...] = (
        jnp.dot(x_ref[...], w_ref[...], preferred_element_type=jnp.float32)
        + b_ref[...].astype(jnp.float32)
    ).astype(out_ref.dtype)


def _split_kernel(x_ref, w_ref, b_ref, mean_ref, lv_ref):
    # Same single matmul; the two halves are stored to separate outputs
    # (used only when each head is >= 128 lanes wide).
    L = mean_ref.shape[-1]
    acc = (
        jnp.dot(x_ref[...], w_ref[...], preferred_element_type=jnp.float32)
        + b_ref[...].astype(jnp.float32)
    )
    mean_ref[...] = acc[:, :L].astype(mean_ref.dtype)
    lv_ref[...] = acc[:, L:].astype(lv_ref.dtype)


def _fused_kernel_ktiled(x_ref, w_ref, b_ref, out_ref, acc_ref):
    k = pl.program_id(1)

    @pl.when(k == 0)
    def _():
        acc_ref[...] = jnp.zeros_like(acc_ref)

    acc_ref[...] += jnp.dot(x_ref[...], w_ref[...],
                            preferred_element_type=jnp.float32)

    @pl.when(k == pl.num_programs(1) - 1)
    def _():
        out_ref[...] = (acc_ref[...]
                        + b_ref[...].astype(jnp.float32)).astype(out_ref.dtype)


def _split_kernel_ktiled(x_ref, w_ref, b_ref, mean_ref, lv_ref, acc_ref):
    k = pl.program_id(1)

    @pl.when(k == 0)
    def _():
        acc_ref[...] = jnp.zeros_like(acc_ref)

    acc_ref[...] += jnp.dot(x_ref[...], w_ref[...],
                            preferred_element_type=jnp.float32)

    @pl.when(k == pl.num_programs(1) - 1)
    def _():
        L = mean_ref.shape[-1]
        acc = acc_ref[...] + b_ref[...].astype(jnp.float32)
        mean_ref[...] = acc[:, :L].astype(mean_ref.dtype)
        lv_ref[...] = acc[:, L:].astype(lv_ref.dtype)


# ---------------------------------------------------------------------------
# Tiling heuristics
# ---------------------------------------------------------------------------
def _round_up(v, m):
    return ((v + m - 1) // m) * m


def _pick_k_tile(H, L2, w_itemsize):
    """K-tile the hidden dim only once the fused weight stops fitting VMEM."""
    if H * L2 * w_itemsize <= _WEIGHT_RESIDENT_LIMIT:
        return None
    for tk in (2048, 1024, 512, 256):
        if H % tk == 0:
            return tk
    # TODO(synk): pad H to a multiple of 256 at parameter-load time when the
    # fused weight exceeds the residency budget and H is not tileable.
    return None


def _pick_batch_tile(B, H, L2, TK, x_isz, w_isz, o_isz):
    """Size the batch tile from the VMEM budget instead of a fixed constant."""
    k_cols = H if TK is None else TK
    # Resident weight bytes: single-buffered when grid-invariant, double-
    # buffered when streamed along the K axis.
    w_resident = k_cols * L2 * w_isz * (1 if TK is None else 2)
    acc_per_row = 0 if TK is None else L2 * 4              # f32 accumulator
    per_row = 2 * k_cols * x_isz + 2 * L2 * o_isz + acc_per_row
    budget = max(_TILE_VMEM_BUDGET - w_resident - 2 * L2 * w_isz, per_row * 8)
    tb = budget // per_row
    tb = min(tb, _MAX_BATCH_TILE, _round_up(B, 8))
    # v7x megacore: make sure a large batch splits into >= 2 "parallel" grid
    # steps so both TensorCores get work (no effect on 1-TC v5e/v6e).
    if B >= 1024:
        tb = min(tb, _round_up(pl.cdiv(B, 2), 8))
    if tb >= 256:
        tb = (tb // 256) * 256        # MXU/sublane friendly
    else:
        tb = max(8, (tb // 8) * 8)
    return int(tb)


# ---------------------------------------------------------------------------
# Launch
# ---------------------------------------------------------------------------
def _launch(x, w_cat, b_cat, L, out_dtype, single_buffer_resident):
    B, H = x.shape
    L2 = w_cat.shape[1]
    x_isz = jnp.dtype(x.dtype).itemsize
    w_isz = jnp.dtype(w_cat.dtype).itemsize
    o_isz = jnp.dtype(out_dtype).itemsize

    # Per-head split stores are only lane-dense (unmasked vst) when L >= 128;
    # otherwise keep the single fused [B, 2L] output and slice in the wrapper.
    split_outputs = L >= 128

    TK = _pick_k_tile(H, L2, w_isz)
    TB = _pick_batch_tile(B, H, L2, TK, x_isz, w_isz, o_isz)
    nb = pl.cdiv(B, TB)

    cost = pl.CostEstimate(
        flops=2 * B * H * L2,
        transcendentals=0,
        bytes_accessed=(x.size * x_isz + w_cat.size * w_isz
                        + b_cat.size * w_isz + B * L2 * o_isz),
    )

    # Grid-invariant operands: single-buffer them (halves their VMEM cost).
    const_kw = dict(pipeline_mode=pl.Buffered(1)) if single_buffer_resident else {}

    if split_outputs:
        out_shape = (jax.ShapeDtypeStruct((B, L), out_dtype),
                     jax.ShapeDtypeStruct((B, L), out_dtype))
    else:
        out_shape = jax.ShapeDtypeStruct((B, L2), out_dtype)

    if TK is None:
        grid = (nb,)
        in_specs = [
            pl.BlockSpec((TB, H), lambda i: (i, 0)),                 # x tile
            pl.BlockSpec((H, L2), lambda i: (0, 0), **const_kw),     # fused W
            pl.BlockSpec((1, L2), lambda i: (0, 0), **const_kw),     # fused b
        ]
        if split_outputs:
            out_specs = (pl.BlockSpec((TB, L), lambda i: (i, 0)),
                         pl.BlockSpec((TB, L), lambda i: (i, 0)))
            kernel = _split_kernel
        else:
            out_specs = pl.BlockSpec((TB, L2), lambda i: (i, 0))
            kernel = _fused_kernel
        scratch_shapes = ()
        dims = ("parallel",)
    else:
        nk = H // TK
        grid = (nb, nk)
        in_specs = [
            pl.BlockSpec((TB, TK), lambda i, k: (i, k)),             # x K-slab
            pl.BlockSpec((TK, L2), lambda i, k: (k, 0)),             # W K-slab
            pl.BlockSpec((1, L2), lambda i, k: (0, 0), **const_kw),  # fused b
        ]
        if split_outputs:
            out_specs = (pl.BlockSpec((TB, L), lambda i, k: (i, 0)),
                         pl.BlockSpec((TB, L), lambda i, k: (i, 0)))
            kernel = _split_kernel_ktiled
        else:
            out_specs = pl.BlockSpec((TB, L2), lambda i, k: (i, 0))
            kernel = _fused_kernel_ktiled
        scratch_shapes = [pltpu.VMEM((TB, L2), jnp.float32)]
        dims = ("parallel", "arbitrary")

    return pl.pallas_call(
        kernel,
        out_shape=out_shape,
        grid=grid,
        in_specs=in_specs,
        out_specs=out_specs,
        scratch_shapes=scratch_shapes,
        compiler_params=pltpu.CompilerParams(
            dimension_semantics=dims,
            vmem_limit_bytes=_VMEM_LIMIT_BYTES,
        ),
        cost_estimate=cost,
    )(x, w_cat, b_cat)


# ---------------------------------------------------------------------------
# Public API
# ---------------------------------------------------------------------------
def fuse_mean_var_params(w_mean, b_mean, w_var, b_var):
    """Fuse the two heads ONCE (at parameter-load time, not per forward)."""
    w_cat = jnp.concatenate([w_mean, w_var], axis=1)                 # [H, 2L]
    b_cat = jnp.concatenate([b_mean, b_var], axis=0).reshape(1, -1)  # [1, 2L]
    return w_cat, b_cat


def mean_var_fused(x, w_cat, b_cat, *, latent_dim=None, compute_dtype=None):
    """x: [B, H]; w_cat: [H, 2L]; b_cat: [1, 2L]. Returns (mean, log_var)."""
    L2 = w_cat.shape[1]
    L = latent_dim if latent_dim is not None else L2 // 2
    out_dtype = x.dtype
    if compute_dtype is not None:
        # bf16 MXU path: cast x/W only; bias add + output stay in f32/out_dtype.
        x = x.astype(compute_dtype)
        w_cat = w_cat.astype(compute_dtype)
    try:
        out = _launch(x, w_cat, b_cat, L, out_dtype, single_buffer_resident=True)
    except Exception:
        # pl.Buffered(1) (single-buffering grid-invariant operands) is not
        # available on every JAX release; fall back to default double-buffering
        # (same semantics, only costs extra VMEM for the resident weight).
        out = _launch(x, w_cat, b_cat, L, out_dtype, single_buffer_resident=False)
    if isinstance(out, (tuple, list)):
        mean, log_var = out
        return mean, log_var
    return out[:, :L], out[:, L:]


def mean_var(x, w_mean, b_mean, w_var, b_var, **kwargs):
    """Convenience wrapper. Prefer fuse_mean_var_params + mean_var_fused so the
    head fusion is not re-done (and re-written to HBM) on every call."""
    w_cat, b_cat = fuse_mean_var_params(w_mean, b_mean, w_var, b_var)
    return mean_var_fused(x, w_cat, b_cat, latent_dim=w_mean.shape[1], **kwargs)


if __name__ == "__main__":
    # Small shapes implied by the module: hidden_dim=32, latent_dim=16, batch=8.
    B, H, L = 8, 32, 16
    key = jax.random.PRNGKey(0)
    kx, kwm, kbm, kwv, kbv = jax.random.split(key, 5)

    x = jax.random.normal(kx, (B, H), dtype=jnp.float32)
    # PyTorch Linear stores W as [L, H]; we keep the transposed [H, L] layout.
    w_mean = jax.random.normal(kwm, (H, L), dtype=jnp.float32) * 0.05
    b_mean = jax.random.normal(kbm, (L,), dtype=jnp.float32) * 0.05
    w_var = jax.random.normal(kwv, (H, L), dtype=jnp.float32) * 0.05
    b_var = jax.random.normal(kbv, (L,), dtype=jnp.float32) * 0.05

    # Head fusion done ONCE (parameter-load time), not inside the forward path.
    w_cat, b_cat = fuse_mean_var_params(w_mean, b_mean, w_var, b_var)

    mean, log_var = mean_var_fused(x, w_cat, b_cat, latent_dim=L)
    jax.block_until_ready((mean, log_var))

    # Correctness check against plain-JAX reference.
    ref_mean = x @ w_mean + b_mean
    ref_var = x @ w_var + b_var
    assert jnp.allclose(mean, ref_mean, atol=1e-5), "mean mismatch"
    assert jnp.allclose(log_var, ref_var, atol=1e-5), "log_var mismatch"

    print("KERNEL_OK")
</pallas_src>

<mosaic_0001>
module attributes {stable_mosaic.version = 11 : i64} {
  func.func @_fused_kernel(%arg0: i32, %arg1: memref<8x32xf32, #tpu.memory_space<vmem>>, %arg2: memref<32x32xf32, #tpu.memory_space<vmem>>, %arg3: memref<1x32xf32, #tpu.memory_space<vmem>>, %arg4: memref<8x32xf32, #tpu.memory_space<vmem>>) attributes {dimension_semantics = [#tpu.dimension_semantics<parallel>], iteration_bounds = array<i64: 1>, scalar_prefetch = 0 : i64, scratch_operands = 0 : i64, tpu.core_type = #tpu.core_type<tc>, window_params = [{transform_indices = @transform_0, window_bounds = array<i64: 8, 32>}, {pipeline_mode = #tpu.pipeline_mode<synchronous>, transform_indices = @transform_1, window_bounds = array<i64: 32, 32>}, {pipeline_mode = #tpu.pipeline_mode<synchronous>, transform_indices = @transform_2, window_bounds = array<i64: 1, 32>}, {transform_indices = @transform_3, window_bounds = array<i64: 8, 32>}]} {
    %c0 = arith.constant 0 : index
    %c0_0 = arith.constant 0 : index
    %0 = vector.load %arg1[%c0, %c0_0] : memref<8x32xf32, #tpu.memory_space<vmem>>, vector<8x32xf32>
    %c0_1 = arith.constant 0 : index
    %c0_2 = arith.constant 0 : index
    %1 = vector.load %arg2[%c0_1, %c0_2] : memref<32x32xf32, #tpu.memory_space<vmem>>, vector<32x32xf32>
    %cst = arith.constant dense<0.000000e+00> : vector<8x32xf32>
    %2 = tpu.matmul %0, %1, %cst {dimension_numbers = #tpu.dot_dimension_numbers<[1], [0], [0], [1], [0, 0, 1, 1], [], []>} : vector<8x32xf32>, vector<32x32xf32>, vector<8x32xf32> -> vector<8x32xf32>
    %c0_3 = arith.constant 0 : index
    %c0_4 = arith.constant 0 : index
    %3 = vector.load %arg3[%c0_3, %c0_4] : memref<1x32xf32, #tpu.memory_space<vmem>>, vector<1x32xf32>
    %4 = vector.broadcast %3 : vector<1x32xf32> to vector<8x32xf32>
    %5 = arith.addf %2, %4 : vector<8x32xf32>
    %c0_5 = arith.constant 0 : index
    %c0_6 = arith.constant 0 : index
    %6 = vector.load %arg4[%c0_5, %c0_6] : memref<8x32xf32, #tpu.memory_space<vmem>>, vector<8x32xf32>
    tpu.vector_store %arg4[%c0_5, %c0_6], %5 {strides = array<i32>} : memref<8x32xf32, #tpu.memory_space<vmem>>, vector<8x32xf32>,
    return
  }
  func.func @transform_0(%arg0: i32) -> (i32, i32) {
    %c0_i32 = arith.constant 0 : i32
    %c0_i32_0 = arith.constant 0 : i32
    return %arg0, %c0_i32 : i32, i32
  }
  func.func @transform_1(%arg0: i32) -> (i32, i32) {
    %c0_i32 = arith.constant 0 : i32
    %c0_i32_0 = arith.constant 0 : i32
    %c0_i32_1 = arith.constant 0 : i32
    return %c0_i32, %c0_i32_0 : i32, i32
  }
  func.func @transform_2(%arg0: i32) -> (i32, i32) {
    %c0_i32 = arith.constant 0 : i32
    %c0_i32_0 = arith.constant 0 : i32
    %c0_i32_1 = arith.constant 0 : i32
    return %c0_i32, %c0_i32_0 : i32, i32
  }
  func.func @transform_3(%arg0: i32) -> (i32, i32) {
    %c0_i32 = arith.constant 0 : i32
    %c0_i32_0 = arith.constant 0 : i32
    return %arg0, %c0_i32 : i32, i32
  }
}

module attributes {stable_mosaic.version = 11 : i64} {
  func.func @_fused_kernel(%arg0: i32, %arg1: memref<8x32xf32, #tpu.memory_space<vmem>>, %arg2: memref<32x32xf32, #tpu.memory_space<vmem>>, %arg3: memref<1x32xf32, #tpu.memory_space<vmem>>, %arg4: memref<8x32xf32, #tpu.memory_space<vmem>>) attributes {dimension_semantics = [#tpu.dimension_semantics<parallel>], iteration_bounds = array<i64: 1>, scalar_prefetch = 0 : i64, scratch_operands = 0 : i64, tpu.core_type = #tpu.core_type<tc>, window_params = [{transform_indices = @transform_0, window_bounds = array<i64: 8, 32>}, {pipeline_mode = #tpu.pipeline_mode<synchronous>, transform_indices = @transform_1, window_bounds = array<i64: 32, 32>}, {pipeline_mode = #tpu.pipeline_mode<synchronous>, transform_indices = @transform_2, window_bounds = array<i64: 1, 32>}, {transform_indices = @transform_3, window_bounds = array<i64: 8, 32>}]} {
    %c0 = arith.constant 0 : index
    %c0_0 = arith.constant 0 : index
    %0 = vector.load %arg1[%c0, %c0_0] : memref<8x32xf32, #tpu.memory_space<vmem>>, vector<8x32xf32>
    %c0_1 = arith.constant 0 : index
    %c0_2 = arith.constant 0 : index
    %1 = vector.load %arg2[%c0_1, %c0_2] : memref<32x32xf32, #tpu.memory_space<vmem>>, vector<32x32xf32>
    %cst = arith.constant dense<0.000000e+00> : vector<8x32xf32>
    %2 = tpu.matmul %0, %1, %cst {dimension_numbers = #tpu.dot_dimension_numbers<[1], [0], [0], [1], [0, 0, 1, 1], [], []>} : vector<8x32xf32>, vector<32x32xf32>, vector<8x32xf32> -> vector<8x32xf32>
    %c0_3 = arith.constant 0 : index
    %c0_4 = arith.constant 0 : index
    %3 = vector.load %arg3[%c0_3, %c0_4] : memref<1x32xf32, #tpu.memory_space<vmem>>, vector<1x32xf32>
    %4 = vector.broadcast %3 : vector<1x32xf32> to vector<8x32xf32>
    %5 = arith.addf %2, %4 : vector<8x32xf32>
    %c0_5 = arith.constant 0 : index
    %c0_6 = arith.constant 0 : index
    %6 = vector.load %arg4[%c0_5, %c0_6] : memref<8x32xf32, #tpu.memory_space<vmem>>, vector<8x32xf32>
    tpu.vector_store %arg4[%c0_5, %c0_6], %5 {strides = array<i32>} : memref<8x32xf32, #tpu.memory_space<vmem>>, vector<8x32xf32>,
    return
  }
  func.func @transform_0(%arg0: i32) -> (i32, i32) {
    %c0_i32 = arith.constant 0 : i32
    %c0_i32_0 = arith.constant 0 : i32
    return %arg0, %c0_i32 : i32, i32
  }
  func.func @transform_1(%arg0: i32) -> (i32, i32) {
    %c0_i32 = arith.constant 0 : i32
    %c0_i32_0 = arith.constant 0 : i32
    %c0_i32_1 = arith.constant 0 : i32
    return %c0_i32, %c0_i32_0 : i32, i32
  }
  func.func @transform_2(%arg0: i32) -> (i32, i32) {
    %c0_i32 = arith.constant 0 : i32
    %c0_i32_0 = arith.constant 0 : i32
    %c0_i32_1 = arith.constant 0 : i32
    return %c0_i32, %c0_i32_0 : i32, i32
  }
  func.func @transform_3(%arg0: i32) -> (i32, i32) {
    %c0_i32 = arith.constant 0 : i32
    %c0_i32_0 = arith.constant 0 : i32
    return %arg0, %c0_i32 : i32, i32
  }
}

</mosaic_0001>

<llo_original>
// kernel: tpu_custom_call.1
$region0: #{tpu_custom_call.1}
  #allocation0 [shape = 'u32[]', space=smem, size = 0x4, offset = 0x4, fixed_abs, tag = 'smem constant byte address 0x4 - core index']
  #allocation1 [shape = 'u32[144,128]{1,0:T(1,128)}', space=vmem, size = 0x12000, scoped, tag = 'internal scratch']
  %s0 = inlined_call_operand.hbm [shape: f32[8,32], index: 0, kind: input, shape index: {}]
  %s1 = inlined_call_operand.hbm [shape: f32[32,32], index: 1, kind: input, shape index: {}]
  %s2 = inlined_call_operand.vmem [shape: f32[1,32], index: 2, kind: input, shape index: {}]
  %s3 = inlined_call_operand.hbm [shape: f32[8,32], index: 3, kind: output, shape index: {}]
  %s4 = sld [smem:[#allocation0]]
  $region30: #{tpu_custom_call.1} parent=0
    _
  %s6 = ssub.s32 1, %s4
  %s7 = scalar_select 0, %s6, %s4
  $region1: #{tpu_custom_call.1} parent=0
    #allocation2 [shape = 'u8[4096]{0}', space=vmem, size = 0x1000, scoped, tag = 'input window, operand 0, single buffered']
    #allocation3 [shape = 's32[1]{0}', space=sflag, size = 0x4, scoped, tag = 'scoped memory for tpu_custom_call.1']
    #allocation4 [shape = 's32[1]{0}', space=sflag, size = 0x4, scoped, tag = 'scoped memory for tpu_custom_call.1']
    #allocation5 [shape = 'u8[16384]{0}', space=vmem, size = 0x4000, scoped, tag = 'input window, operand 1, single buffered']
    #allocation6 [shape = 's32[1]{0}', space=sflag, size = 0x4, scoped, tag = 'scoped memory for tpu_custom_call.1']
    #allocation7 [shape = 'u8[4096]{0}', space=vmem, size = 0x1000, scoped, tag = 'output window, operand 0, single buffered']
    %8 = vsyncpa [#allocation3], 0
    %9 = vsyncpa [#allocation6], 0
    %10 = vsyncpa [#allocation4], 0
    // Predicated region
    $region2: #{tpu_custom_call.1} parent=1 // pred_check
      _
    $region3: #{tpu_custom_call.1} parent=1 // pred_check_branch
      %12 = sbr.rel (0) target = $region5
    $region4: #{tpu_custom_call.1} parent=1 // pred_region
      %s14 = ssub.s32 128, 128
      %15 = vsyncadd [#allocation3], %s14
      %s17 = sshll.u32 [#allocation2], 4
      %s18 = int_to_ptr.vmem [resolvable:$true] %s17
      %20 = dma.hbm_to_vmem [thread:$0]  %s0, 128, %s18, [#allocation3]
    $region5: #{tpu_custom_call.1} parent=1 // pred_fallthru
      _
    // Predicated region
    $region6: #{tpu_custom_call.1} parent=1 // pred_check
      _
    $region7: #{tpu_custom_call.1} parent=1 // pred_check_branch
      %22 = sbr.rel (0) target = $region9
    $region8: #{tpu_custom_call.1} parent=1 // pred_region
      %s24 = ssub.s32 512, 512
      %25 = vsyncadd [#allocation6], %s24
      %s26 = sshll.u32 [#allocation5], 4
      %s27 = int_to_ptr.vmem [resolvable:$true] %s26
      %32 = dma.hbm_to_vmem [thread:$0]  %s1, 512, %s27, [#allocation6], 128, 128, 8
    $region9: #{tpu_custom_call.1} parent=1 // pred_fallthru
      _
    // Predicated region
    $region10: #{tpu_custom_call.1} parent=1 // pred_check
      _
    $region11: #{tpu_custom_call.1} parent=1 // pred_check_branch
      %34 = sbr.rel (0) target = $region13
    $region12: #{tpu_custom_call.1} parent=1 // pred_region
      _
    $region13: #{tpu_custom_call.1} parent=1 // pred_fallthru
      _
    // Predicated region
    $region14: #{tpu_custom_call.1} parent=1 // pred_check
      _
    $region15: #{tpu_custom_call.1} parent=1 // pred_check_branch
      %36 = sbr.rel (0) target = $region17
    $region16: #{tpu_custom_call.1} parent=1 // pred_region
      %37 = dma.done [#allocation3], 128
    $region17: #{tpu_custom_call.1} parent=1 // pred_fallthru
      _
    // Predicated region
    $region18: #{tpu_custom_call.1} parent=1 // pred_check
      _
    $region19: #{tpu_custom_call.1} parent=1 // pred_check_branch
      %39 = sbr.rel (0) target = $region21
    $region20: #{tpu_custom_call.1} parent=1 // pred_region
      %40 = dma.done [#allocation6], 512
    $region21: #{tpu_custom_call.1} parent=1 // pred_fallthru
      _
    %v41 = vld [vmem:[#allocation2] sm:$0xff]
    %v42 = vld [vmem:[#allocation5] sm:$0xff]
    %v43 = vld [vmem:[#allocation5 + $0x8] sm:$0xff]
    %v44 = vld [vmem:[#allocation5 + $0x10] sm:$0xff]
    %v45 = vld [vmem:[#allocation5 + $0x18] sm:$0xff]
    %v46 = vld [vmem:[%s2] sm:$0x1]
    %v48 = vlaneseq
    %v49 = vshrl.u32 %v48, 7
    %v50 = vsub.s32 0, %v49
    %v51 = vrot.slane %v46, %v50
    %vm53 = vcmask 261120
    %v55 = vsel %vm53, %v41, 0
    %57 = vmatprep.subr.mxu0 0.0
    %58 = vmatpush1.msra.mxu0 %v42
    %59 = vmatprep.subr.mxu0 0.0
    %60 = vmatpush1.msra.mxu0 %v43
    %61 = vmatprep.subr.mxu0 0.0
    %62 = vmatpush1.msra.mxu0 %v44
    %63 = vmatprep.subr.mxu0 0.0
    %64 = vmatpush1.msra.mxu0 %v45
    %65 = vmatprep.subr.mxu0 0.0
    %66 = vmatpush1.msra.mxu0 0.0
    %67 = vmatprep.subr.mxu0 0.0
    %68 = vmatpush1.msra.mxu0 0.0
    %69 = vmatprep.subr.mxu0 0.0
    %70 = vmatpush1.msra.mxu0 0.0
    %71 = vmatprep.subr.mxu0 0.0
    %72 = vmatpush1.msra.mxu0 0.0
    %73 = vmatprep.subr.mxu0 0.0
    %74 = vmatpush1.msra.mxu0 0.0
    %75 = vmatprep.subr.mxu0 0.0
    %76 = vmatpush1.msra.mxu0 0.0
    %77 = vmatprep.subr.mxu0 0.0
    %78 = vmatpush1.msra.mxu0 0.0
    %79 = vmatprep.subr.mxu0 0.0
    %80 = vmatpush1.msra.mxu0 0.0
    %81 = vmatprep.subr.mxu0 0.0
    %82 = vmatpush1.msra.mxu0 0.0
    %83 = vmatprep.subr.mxu0 0.0
    %84 = vmatpush1.msra.mxu0 0.0
    %85 = vmatprep.subr.mxu0 0.0
    %86 = vmatpush1.msra.mxu0 0.0
    %87 = vmatprep.subr.mxu0 0.0
    %88 = vmatpush1.msra.mxu0 0.0
    %89 = vmatprep.subr.mxu0 0.0
    %90 = vmatpush1.msra.mxu0 0.0
    %91 = vmatprep.subr.mxu0 0.0
    %92 = vmatpush1.msra.mxu0 0.0
    %93 = vmatprep.subr.mxu0 0.0
    %94 = vmatpush1.msra.mxu0 0.0
    %95 = vmatprep.subr.mxu0 0.0
    %96 = vmatpush1.msra.mxu0 0.0
    %97 = vmatprep.subr.mxu0 0.0
    %98 = vmatpush1.msra.mxu0 0.0
    %99 = vmatprep.subr.mxu0 0.0
    %100 = vmatpush1.msra.mxu0 0.0
    %101 = vmatprep.subr.mxu0 0.0
    %102 = vmatpush1.msra.mxu0 0.0
    %103 = vmatprep.subr.mxu0 0.0
    %104 = vmatpush1.msra.mxu0 0.0
    %105 = vmatprep.subr.mxu0 0.0
    %106 = vmatpush1.msra.mxu0 0.0
    %107 = vmatprep.subr.mxu0 0.0
    %108 = vmatpush1.msra.mxu0 0.0
    %109 = vmatprep.subr.mxu0 0.0
    %110 = vmatpush1.msra.mxu0 0.0
    %111 = vmatprep.subr.mxu0 0.0
    %112 = vmatpush1.msra.mxu0 0.0
    %113 = vmatprep.subr.mxu0 0.0
    %114 = vmatpush1.msra.mxu0 0.0
    %115 = vmatprep.subr.mxu0 0.0
    %116 = vmatpush1.msra.mxu0 0.0
    %117 = vmatprep.subr.mxu0 0.0
    %118 = vmatpush1.msra.mxu0 0.0
    %119 = vmatprep.subr.mxu0 0.0
    %120 = vmatpush1.msra.mxu0 0.0
    %121 = vmatprep.mubr.f32.mxu0 0.0
    %122 = vmatmul.mubr.f32.gmra.mrb[0].mxu0 %v55
    %v123 = vpop.f32.mrb[0].mxu0
    %v124 = vadd.f32 %v51, %v123
    %v125 = vpop.f32.mrb[0].mxu0
    %126 = vdwg.mxu0
    %127 = vst.msk [vmem:[#allocation7] sm:$0xff] %vm53, %v124
    // Predicated region
    $region22: #{tpu_custom_call.1} parent=1 // pred_check
      _
    $region23: #{tpu_custom_call.1} parent=1 // pred_check_branch
      %129 = sbr.rel (0) target = $region25
    $region24: #{tpu_custom_call.1} parent=1 // pred_region
      %s131 = ssub.s32 128, 128
      %132 = vsyncadd [#allocation4], %s131
      %s134 = sshll.u32 [#allocation7], 4
      %s135 = int_to_ptr.vmem [resolvable:$true] %s134
      %137 = dma.vmem_to_hbm [thread:$0]  %s135, 128, %s3, [#allocation4]
    $region25: #{tpu_custom_call.1} parent=1 // pred_fallthru
      _
    // Predicated region
    $region26: #{tpu_custom_call.1} parent=1 // pred_check
      _
    $region27: #{tpu_custom_call.1} parent=1 // pred_check_branch
      %139 = sbr.rel (0) target = $region29
    $region28: #{tpu_custom_call.1} parent=1 // pred_region
      %140 = dma.done [#allocation4], 128
    $region29: #{tpu_custom_call.1} parent=1 // pred_fallthru
      _
    %141 = vsyncpa [#allocation3], 1
    %142 = vsyncpa [#allocation6], 1
    %143 = vsyncpa [#allocation4], 1

// kernel: tpu_custom_call.1
$region0: #{tpu_custom_call.1}
  #allocation0 [shape = 'u32[]', space=smem, size = 0x4, offset = 0x4, fixed_abs, tag = 'smem constant byte address 0x4 - core index']
  #allocation1 [shape = 'u32[144,128]{1,0:T(1,128)}', space=vmem, size = 0x12000, scoped, tag = 'internal scratch']
  %s0 = inlined_call_operand.hbm [shape: f32[8,32], index: 0, kind: input, shape index: {}]
  %s1 = inlined_call_operand.hbm [shape: f32[32,32], index: 1, kind: input, shape index: {}]
  %s2 = inlined_call_operand.vmem [shape: f32[1,32], index: 2, kind: input, shape index: {}]
  %s3 = inlined_call_operand.hbm [shape: f32[8,32], index: 3, kind: output, shape index: {}]
  %s4 = sld [smem:[#allocation0]]
  $region30: #{tpu_custom_call.1} parent=0
    _
  %s6 = ssub.s32 1, %s4
  %s7 = scalar_select 0, %s6, %s4
  $region1: #{tpu_custom_call.1} parent=0
    #allocation2 [shape = 'u8[4096]{0}', space=vmem, size = 0x1000, scoped, tag = 'input window, operand 0, single buffered']
    #allocation3 [shape = 's32[1]{0}', space=sflag, size = 0x4, scoped, tag = 'scoped memory for tpu_custom_call.1']
    #allocation4 [shape = 's32[1]{0}', space=sflag, size = 0x4, scoped, tag = 'scoped memory for tpu_custom_call.1']
    #allocation5 [shape = 'u8[16384]{0}', space=vmem, size = 0x4000, scoped, tag = 'input window, operand 1, single buffered']
    #allocation6 [shape = 's32[1]{0}', space=sflag, size = 0x4, scoped, tag = 'scoped memory for tpu_custom_call.1']
    #allocation7 [shape = 'u8[4096]{0}', space=vmem, size = 0x1000, scoped, tag = 'output window, operand 0, single buffered']
    %8 = vsyncpa [#allocation3], 0
    %9 = vsyncpa [#allocation6], 0
    %10 = vsyncpa [#allocation4], 0
    // Predicated region
    $region2: #{tpu_custom_call.1} parent=1 // pred_check
      _
    $region3: #{tpu_custom_call.1} parent=1 // pred_check_branch
      %12 = sbr.rel (0) target = $region5
    $region4: #{tpu_custom_call.1} parent=1 // pred_region
      %s14 = ssub.s32 128, 128
      %15 = vsyncadd [#allocation3], %s14
      %s17 = sshll.u32 [#allocation2], 4
      %s18 = int_to_ptr.vmem [resolvable:$true] %s17
      %20 = dma.hbm_to_vmem [thread:$0]  %s0, 128, %s18, [#allocation3]
    $region5: #{tpu_custom_call.1} parent=1 // pred_fallthru
      _
    // Predicated region
    $region6: #{tpu_custom_call.1} parent=1 // pred_check
      _
    $region7: #{tpu_custom_call.1} parent=1 // pred_check_branch
      %22 = sbr.rel (0) target = $region9
    $region8: #{tpu_custom_call.1} parent=1 // pred_region
      %s24 = ssub.s32 512, 512
      %25 = vsyncadd [#allocation6], %s24
      %s26 = sshll.u32 [#allocation5], 4
      %s27 = int_to_ptr.vmem [resolvable:$true] %s26
      %32 = dma.hbm_to_vmem [thread:$0]  %s1, 512, %s27, [#allocation6], 128, 128, 8
    $region9: #{tpu_custom_call.1} parent=1 // pred_fallthru
      _
    // Predicated region
    $region10: #{tpu_custom_call.1} parent=1 // pred_check
      _
    $region11: #{tpu_custom_call.1} parent=1 // pred_check_branch
      %34 = sbr.rel (0) target = $region13
    $region12: #{tpu_custom_call.1} parent=1 // pred_region
      _
    $region13: #{tpu_custom_call.1} parent=1 // pred_fallthru
      _
    // Predicated region
    $region14: #{tpu_custom_call.1} parent=1 // pred_check
      _
    $region15: #{tpu_custom_call.1} parent=1 // pred_check_branch
      %36 = sbr.rel (0) target = $region17
    $region16: #{tpu_custom_call.1} parent=1 // pred_region
      %37 = dma.done [#allocation3], 128
    $region17: #{tpu_custom_call.1} parent=1 // pred_fallthru
      _
    // Predicated region
    $region18: #{tpu_custom_call.1} parent=1 // pred_check
      _
    $region19: #{tpu_custom_call.1} parent=1 // pred_check_branch
      %39 = sbr.rel (0) target = $region21
    $region20: #{tpu_custom_call.1} parent=1 // pred_region
      %40 = dma.done [#allocation6], 512
    $region21: #{tpu_custom_call.1} parent=1 // pred_fallthru
      _
    %v41 = vld [vmem:[#allocation2] sm:$0xff]
    %v42 = vld [vmem:[#allocation5] sm:$0xff]
    %v43 = vld [vmem:[#allocation5 + $0x8] sm:$0xff]
    %v44 = vld [vmem:[#allocation5 + $0x10] sm:$0xff]
    %v45 = vld [vmem:[#allocation5 + $0x18] sm:$0xff]
    %v46 = vld [vmem:[%s2] sm:$0x1]
    %v48 = vlaneseq
    %v49 = vshrl.u32 %v48, 7
    %v50 = vsub.s32 0, %v49
    %v51 = vrot.slane %v46, %v50
    %vm53 = vcmask 261120
    %v55 = vsel %vm53, %v41, 0
    %57 = vmatprep.subr.mxu0 0.0
    %58 = vmatpush1.msra.mxu0 %v42
    %59 = vmatprep.subr.mxu0 0.0
    %60 = vmatpush1.msra.mxu0 %v43
    %61 = vmatprep.subr.mxu0 0.0
    %62 = vmatpush1.msra.mxu0 %v44
    %63 = vmatprep.subr.mxu0 0.0
    %64 = vmatpush1.msra.mxu0 %v45
    %65 = vmatprep.subr.mxu0 0.0
    %66 = vmatpush1.msra.mxu0 0.0
    %67 = vmatprep.subr.mxu0 0.0
    %68 = vmatpush1.msra.mxu0 0.0
    %69 = vmatprep.subr.mxu0 0.0
    %70 = vmatpush1.msra.mxu0 0.0
    %71 = vmatprep.subr.mxu0 0.0
    %72 = vmatpush1.msra.mxu0 0.0
    %73 = vmatprep.subr.mxu0 0.0
    %74 = vmatpush1.msra.mxu0 0.0
    %75 = vmatprep.subr.mxu0 0.0
    %76 = vmatpush1.msra.mxu0 0.0
    %77 = vmatprep.subr.mxu0 0.0
    %78 = vmatpush1.msra.mxu0 0.0
    %79 = vmatprep.subr.mxu0 0.0
    %80 = vmatpush1.msra.mxu0 0.0
    %81 = vmatprep.subr.mxu0 0.0
    %82 = vmatpush1.msra.mxu0 0.0
    %83 = vmatprep.subr.mxu0 0.0
    %84 = vmatpush1.msra.mxu0 0.0
    %85 = vmatprep.subr.mxu0 0.0
    %86 = vmatpush1.msra.mxu0 0.0
    %87 = vmatprep.subr.mxu0 0.0
    %88 = vmatpush1.msra.mxu0 0.0
    %89 = vmatprep.subr.mxu0 0.0
    %90 = vmatpush1.msra.mxu0 0.0
    %91 = vmatprep.subr.mxu0 0.0
    %92 = vmatpush1.msra.mxu0 0.0
    %93 = vmatprep.subr.mxu0 0.0
    %94 = vmatpush1.msra.mxu0 0.0
    %95 = vmatprep.subr.mxu0 0.0
    %96 = vmatpush1.msra.mxu0 0.0
    %97 = vmatprep.subr.mxu0 0.0
    %98 = vmatpush1.msra.mxu0 0.0
    %99 = vmatprep.subr.mxu0 0.0
    %100 = vmatpush1.msra.mxu0 0.0
    %101 = vmatprep.subr.mxu0 0.0
    %102 = vmatpush1.msra.mxu0 0.0
    %103 = vmatprep.subr.mxu0 0.0
    %104 = vmatpush1.msra.mxu0 0.0
    %105 = vmatprep.subr.mxu0 0.0
    %106 = vmatpush1.msra.mxu0 0.0
    %107 = vmatprep.subr.mxu0 0.0
    %108 = vmatpush1.msra.mxu0 0.0
    %109 = vmatprep.subr.mxu0 0.0
    %110 = vmatpush1.msra.mxu0 0.0
    %111 = vmatprep.subr.mxu0 0.0
    %112 = vmatpush1.msra.mxu0 0.0
    %113 = vmatprep.subr.mxu0 0.0
    %114 = vmatpush1.msra.mxu0 0.0
    %115 = vmatprep.subr.mxu0 0.0
    %116 = vmatpush1.msra.mxu0 0.0
    %117 = vmatprep.subr.mxu0 0.0
    %118 = vmatpush1.msra.mxu0 0.0
    %119 = vmatprep.subr.mxu0 0.0
    %120 = vmatpush1.msra.mxu0 0.0
    %121 = vmatprep.mubr.f32.mxu0 0.0
    %122 = vmatmul.mubr.f32.gmra.mrb[0].mxu0 %v55
    %v123 = vpop.f32.mrb[0].mxu0
    %v124 = vadd.f32 %v51, %v123
    %v125 = vpop.f32.mrb[0].mxu0
    %126 = vdwg.mxu0
    %127 = vst.msk [vmem:[#allocation7] sm:$0xff] %vm53, %v124
    // Predicated region
    $region22: #{tpu_custom_call.1} parent=1 // pred_check
      _
    $region23: #{tpu_custom_call.1} parent=1 // pred_check_branch
      %129 = sbr.rel (0) target = $region25
    $region24: #{tpu_custom_call.1} parent=1 // pred_region
      %s131 = ssub.s32 128, 128
      %132 = vsyncadd [#allocation4], %s131
      %s134 = sshll.u32 [#allocation7], 4
      %s135 = int_to_ptr.vmem [resolvable:$true] %s134
      %137 = dma.vmem_to_hbm [thread:$0]  %s135, 128, %s3, [#allocation4]
    $region25: #{tpu_custom_call.1} parent=1 // pred_fallthru
      _
    // Predicated region
    $region26: #{tpu_custom_call.1} parent=1 // pred_check
      _
    $region27: #{tpu_custom_call.1} parent=1 // pred_check_branch
      %139 = sbr.rel (0) target = $region29
    $region28: #{tpu_custom_call.1} parent=1 // pred_region
      %140 = dma.done [#allocation4], 128
    $region29: #{tpu_custom_call.1} parent=1 // pred_fallthru
      _
    %141 = vsyncpa [#allocation3], 1
    %142 = vsyncpa [#allocation6], 1
    %143 = vsyncpa [#allocation4], 1

</llo_original>
